<compile_context>
chip_gen: v7x
topology: tpu7x:2x2x1
jax: 0.10.0
libtpu: 0.0.40
codegen_flags: <defaults>
</compile_context>

<pallas_src>
import functools

import jax
import jax.numpy as jnp
from jax.experimental import pallas as pl
from jax.experimental.pallas import tpu as pltpu


def _round_up(n, m):
    return ((n + m - 1) // m) * m


def _cdiv(a, b):
    return (a + b - 1) // b


# one tile when grid == 1 (8 rows * 4 B * 32768 lanes = 1 MiB per slab)
_MAX_SINGLE_TILE = 32768
# per-tile lane cap when gridding (8 rows * 4 B * 131072 lanes = 4 MiB per slab)
_MAX_TILE = 131072


def _to25d_kernel(in_ref, out_ref, *, trans_factor, scale_factor,
                  off_z, half_w, half_h):
    """Lane-dense elementwise hot path of recover_3d_proj_pinhole.

    in_ref  : (8, T) rows = [trans_x, trans_y, scale, focal, cx, cy, 1/focal, pad]
    out_ref : (8, T) rows = [x0, y0, X0, Y0, z0, pad, pad, pad]
    """
    x = in_ref[...]                                       # one whole-tile load

    x0 = x[0:1, :] * trans_factor + half_w                # est_xy0.x
    y0 = x[1:2, :] * trans_factor + half_h                # est_xy0.y
    z0 = x[3:4, :] * (x[2:3, :] * scale_factor) + off_z   # focal*est_scale + off_z
    z_over_f = z0 * x[6:7, :]                             # z0 * (1/focal), no divide
    X0 = (x0 - x[4:5, :]) * z_over_f
    Y0 = (y0 - x[5:6, :]) * z_over_f

    # single unmasked full-tile store; rows 5..7 are don't-care padding
    out_ref[...] = jnp.concatenate([x0, y0, X0, Y0, z0, z0, z0, z0], axis=0)


def to25d_branch(image, camintr, scaletrans, *,
                 trans_factor=1.0, scale_factor=1.0, off_z=0.4):
    """Equivalent of To25DBranch(trans_factor, scale_factor).forward(...).

    image      : (B, C, H, W) float32  (sample[TransQueries.IMAGE]; only H/W used)
    camintr    : (B, 3, 3)    float32  (sample[TransQueries.CAMINTR])
    scaletrans : (B, J, 3)    float32  ([:, :, :2] = trans, [:, :, 2] = scale)
    """
    scaletrans = scaletrans.astype(jnp.float32)
    camintr = camintr.astype(jnp.float32)
    B, J, _ = scaletrans.shape
    H, W = int(image.shape[2]), int(image.shape[3])
    N = B * J

    # ---- lane tiling: one big tile (grid=1) unless N is huge ----------------
    if N <= _MAX_SINGLE_TILE:
        tile = _round_up(max(N, 128), 128)
        grid = 1
    else:
        half = _round_up(_cdiv(N, 2), 128)
        if half <= _MAX_TILE:
            tile = half       # two equal halves -> both v7x TensorCores
            grid = 2
        else:
            tile = _MAX_TILE
            grid = _cdiv(N, tile)
    n_pad = tile * grid

    # ---- build the single lane-dense (8, n_pad) input slab ------------------
    st_rows = jnp.transpose(scaletrans, (2, 0, 1)).reshape(3, N)   # tx, ty, sc
    focal = camintr[:, 0, 0]
    cam_stack = jnp.stack(
        [focal, camintr[:, 0, 2], camintr[:, 1, 2], 1.0 / focal], axis=0)  # (4, B)
    cam_rows = jnp.broadcast_to(cam_stack[:, :, None], (4, B, J)).reshape(4, N)
    data = jnp.concatenate([st_rows, cam_rows], axis=0)            # (7, N)
    # zero-padded lanes stay finite: focal=0, 1/focal=0 -> z_over_f = 0
    in_slab = jnp.pad(data, ((0, 1), (0, n_pad - N)))               # (8, n_pad)

    kernel = functools.partial(
        _to25d_kernel,
        trans_factor=float(trans_factor),
        scale_factor=float(scale_factor),
        off_z=float(off_z),
        half_w=float(W) / 2.0,   # forward passes input_res=(width, height)
        half_h=float(H) / 2.0,
    )

    out_slab = pl.pallas_call(
        kernel,
        out_shape=jax.ShapeDtypeStruct((8, n_pad), jnp.float32),
        grid_spec=pltpu.PrefetchScalarGridSpec(
            num_scalar_prefetch=0,
            grid=(grid,),
            in_specs=[pl.BlockSpec((8, tile), lambda i: (0, i))],
            out_specs=pl.BlockSpec((8, tile), lambda i: (0, i)),
        ),
        compiler_params=pltpu.CompilerParams(
            dimension_semantics=("parallel",),
            vmem_limit_bytes=32 << 20),
        cost_estimate=pl.CostEstimate(
            flops=10 * n_pad,
            transcendentals=0,
            bytes_accessed=(8 + 8) * 4 * n_pad),
    )(in_slab)

    # ---- unpack the slab back to the PyTorch (B, J, C) convention -----------
    valid = out_slab[:5, :N]                                        # (5, N)
    rep2d = jnp.transpose(valid[0:2].reshape(2, B, J), (1, 2, 0))   # (B, J, 2)
    rep3d = jnp.transpose(valid[2:5].reshape(3, B, J), (1, 2, 0))   # (B, J, 3)
    rep_absz = rep3d[:, :, 2:3]                                     # aliases z row
    return {"rep2d": rep2d, "rep_absz": rep_absz, "rep3d": rep3d}


def _reference(image, camintr, scaletrans, trans_factor, scale_factor, off_z=0.4):
    """Pure-JAX transcription of the PyTorch forward for verification."""
    H, W = int(image.shape[2]), int(image.shape[3])
    trans = scaletrans[:, :, :2] * trans_factor                     # (B, J, 2)
    scale = scaletrans[:, :, 2:3] * scale_factor                    # (B, J, 1)
    focal = camintr[:, 0:1, 0:1]                                    # (B, 1, 1)
    z0 = focal * scale + off_z                                      # (B, J, 1)
    cam_centers = camintr[:, :2, 2][:, None, :]                     # (B, 1, 2)
    img_centers = jnp.array([W / 2.0, H / 2.0], jnp.float32)[None, None, :]
    xy0 = trans + img_centers                                       # (B, J, 2)
    XY0 = (xy0 - cam_centers) * z0 / focal                          # (B, J, 2)
    c3d = jnp.concatenate([XY0, z0], axis=-1)                       # (B, J, 3)
    return {"rep2d": xy0, "rep_absz": z0, "rep3d": c3d}


if __name__ == "__main__":
    key = jax.random.PRNGKey(0)
    k_img, k_st, k_f, k_c = jax.random.split(key, 4)

    B, C, H, W, J = 2, 3, 16, 16, 8
    # deterministic "module parameters" (constructor scalars of To25DBranch)
    TRANS_FACTOR = 100.0
    SCALE_FACTOR = 0.0001

    image = jax.random.normal(k_img, (B, C, H, W), dtype=jnp.float32)
    scaletrans = jax.random.normal(k_st, (B, J, 3), dtype=jnp.float32)

    focal = jax.random.uniform(k_f, (B,), minval=100.0, maxval=500.0)
    centers = jax.random.uniform(k_c, (B, 2), minval=6.0, maxval=10.0)
    camintr = jnp.zeros((B, 3, 3), jnp.float32)
    camintr = camintr.at[:, 0, 0].set(focal).at[:, 1, 1].set(focal)
    camintr = camintr.at[:, 0, 2].set(centers[:, 0])
    camintr = camintr.at[:, 1, 2].set(centers[:, 1])
    camintr = camintr.at[:, 2, 2].set(1.0)

    out = to25d_branch(image, camintr, scaletrans,
                       trans_factor=TRANS_FACTOR, scale_factor=SCALE_FACTOR)
    out = jax.tree_util.tree_map(jax.block_until_ready, out)

    ref = _reference(image, camintr, scaletrans, TRANS_FACTOR, SCALE_FACTOR)
    for name in ("rep2d", "rep_absz", "rep3d"):
        assert out[name].shape == ref[name].shape, (name, out[name].shape)
        assert jnp.allclose(out[name], ref[name], rtol=1e-5, atol=1e-5), name

    print("KERNEL_OK")
</pallas_src>

<mosaic_0001>
module attributes {stable_mosaic.version = 11 : i64} {
  func.func @_to25d_kernel(%arg0: i32, %arg1: memref<8x128xf32, #tpu.memory_space<vmem>>, %arg2: memref<8x128xf32, #tpu.memory_space<vmem>>) attributes {dimension_semantics = [#tpu.dimension_semantics<parallel>], iteration_bounds = array<i64: 1>, scalar_prefetch = 0 : i64, scratch_operands = 0 : i64, tpu.core_type = #tpu.core_type<tc>, window_params = [{transform_indices = @transform_0, window_bounds = array<i64: 8, 128>}, {transform_indices = @transform_1, window_bounds = array<i64: 8, 128>}]} {
    %c0 = arith.constant 0 : index
    %c0_0 = arith.constant 0 : index
    %0 = vector.load %arg1[%c0, %c0_0] : memref<8x128xf32, #tpu.memory_space<vmem>>, vector<8x128xf32>
    %1 = vector.extract_strided_slice %0 {offsets = [0, 0], sizes = [1, 128], strides = [1, 1]} : vector<8x128xf32> to vector<1x128xf32>
    %cst = arith.constant 1.000000e+02 : f32
    %2 = vector.broadcast %cst : f32 to vector<1x128xf32>
    %3 = arith.mulf %1, %2 : vector<1x128xf32>
    %cst_1 = arith.constant 8.000000e+00 : f32
    %4 = vector.broadcast %cst_1 : f32 to vector<1x128xf32>
    %5 = arith.addf %3, %4 : vector<1x128xf32>
    %6 = vector.extract_strided_slice %0 {offsets = [1, 0], sizes = [1, 128], strides = [1, 1]} : vector<8x128xf32> to vector<1x128xf32>
    %cst_2 = arith.constant 1.000000e+02 : f32
    %7 = vector.broadcast %cst_2 : f32 to vector<1x128xf32>
    %8 = arith.mulf %6, %7 : vector<1x128xf32>
    %cst_3 = arith.constant 8.000000e+00 : f32
    %9 = vector.broadcast %cst_3 : f32 to vector<1x128xf32>
    %10 = arith.addf %8, %9 : vector<1x128xf32>
    %11 = vector.extract_strided_slice %0 {offsets = [3, 0], sizes = [1, 128], strides = [1, 1]} : vector<8x128xf32> to vector<1x128xf32>
    %12 = vector.extract_strided_slice %0 {offsets = [2, 0], sizes = [1, 128], strides = [1, 1]} : vector<8x128xf32> to vector<1x128xf32>
    %cst_4 = arith.constant 9.99999974E-5 : f32
    %13 = vector.broadcast %cst_4 : f32 to vector<1x128xf32>
    %14 = arith.mulf %12, %13 : vector<1x128xf32>
    %15 = arith.mulf %11, %14 : vector<1x128xf32>
    %cst_5 = arith.constant 4.000000e-01 : f32
    %16 = vector.broadcast %cst_5 : f32 to vector<1x128xf32>
    %17 = arith.addf %15, %16 : vector<1x128xf32>
    %18 = vector.extract_strided_slice %0 {offsets = [6, 0], sizes = [1, 128], strides = [1, 1]} : vector<8x128xf32> to vector<1x128xf32>
    %19 = arith.mulf %17, %18 : vector<1x128xf32>
    %20 = vector.extract_strided_slice %0 {offsets = [4, 0], sizes = [1, 128], strides = [1, 1]} : vector<8x128xf32> to vector<1x128xf32>
    %21 = arith.subf %5, %20 : vector<1x128xf32>
    %22 = arith.mulf %21, %19 : vector<1x128xf32>
    %23 = vector.extract_strided_slice %0 {offsets = [5, 0], sizes = [1, 128], strides = [1, 1]} : vector<8x128xf32> to vector<1x128xf32>
    %24 = arith.subf %10, %23 : vector<1x128xf32>
    %25 = arith.mulf %24, %19 : vector<1x128xf32>
    %26 = tpu.concatenate %5, %10, %22, %25, %17, %17, %17, %17 in 0 : vector<1x128xf32>, vector<1x128xf32>, vector<1x128xf32>, vector<1x128xf32>, vector<1x128xf32>, vector<1x128xf32>, vector<1x128xf32>, vector<1x128xf32> -> vector<8x128xf32>
    %c0_6 = arith.constant 0 : index
    %c0_7 = arith.constant 0 : index
    %27 = vector.load %arg2[%c0_6, %c0_7] : memref<8x128xf32, #tpu.memory_space<vmem>>, vector<8x128xf32>
    tpu.vector_store %arg2[%c0_6, %c0_7], %26 {strides = array<i32>} : memref<8x128xf32, #tpu.memory_space<vmem>>, vector<8x128xf32>,
    return
  }
  func.func @transform_0(%arg0: i32) -> (i32, i32) {
    %c0_i32 = arith.constant 0 : i32
    %c0_i32_0 = arith.constant 0 : i32
    return %c0_i32, %arg0 : i32, i32
  }
  func.func @transform_1(%arg0: i32) -> (i32, i32) {
    %c0_i32 = arith.constant 0 : i32
    %c0_i32_0 = arith.constant 0 : i32
    return %c0_i32, %arg0 : i32, i32
  }
}

</mosaic_0001>

<llo_original>
// kernel: tpu_custom_call.1
$region0: #{tpu_custom_call.1}
  #allocation0 [shape = 'u32[]', space=smem, size = 0x4, offset = 0x4, fixed_abs, tag = 'smem constant byte address 0x4 - core index']
  #allocation1 [shape = 'u32[144,128]{1,0:T(1,128)}', space=vmem, size = 0x12000, scoped, tag = 'internal scratch']
  %s0 = inlined_call_operand.hbm [shape: f32[8,128], index: 0, kind: input, shape index: {}]
  %s1 = inlined_call_operand.hbm [shape: f32[8,128], index: 1, kind: output, shape index: {}]
  %s2 = sld [smem:[#allocation0]]
  $region18: #{tpu_custom_call.1} parent=0
    _
  %s4 = ssub.s32 1, %s2
  %s5 = scalar_select 0, %s4, %s2
  $region1: #{tpu_custom_call.1} parent=0
    #allocation2 [shape = 'u8[4096]{0}', space=vmem, size = 0x1000, scoped, tag = 'input window, operand 0, single buffered']
    #allocation3 [shape = 's32[1]{0}', space=sflag, size = 0x4, scoped, tag = 'scoped memory for tpu_custom_call.1']
    #allocation4 [shape = 's32[1]{0}', space=sflag, size = 0x4, scoped, tag = 'scoped memory for tpu_custom_call.1']
    #allocation5 [shape = 'u8[4096]{0}', space=vmem, size = 0x1000, scoped, tag = 'output window, operand 0, single buffered']
    %6 = vsyncpa [#allocation3], 0
    %7 = vsyncpa [#allocation4], 0
    // Predicated region
    $region2: #{tpu_custom_call.1} parent=1 // pred_check
      _
    $region3: #{tpu_custom_call.1} parent=1 // pred_check_branch
      %9 = sbr.rel (0) target = $region5
    $region4: #{tpu_custom_call.1} parent=1 // pred_region
      %s11 = ssub.s32 128, 128
      %12 = vsyncadd [#allocation3], %s11
      %s14 = sshll.u32 [#allocation2], 4
      %s15 = int_to_ptr.vmem [resolvable:$true] %s14
      %17 = dma.hbm_to_vmem [thread:$0]  %s0, 128, %s15, [#allocation3]
    $region5: #{tpu_custom_call.1} parent=1 // pred_fallthru
      _
    // Predicated region
    $region6: #{tpu_custom_call.1} parent=1 // pred_check
      _
    $region7: #{tpu_custom_call.1} parent=1 // pred_check_branch
      %19 = sbr.rel (0) target = $region9
    $region8: #{tpu_custom_call.1} parent=1 // pred_region
      %20 = dma.done [#allocation3], 128
    $region9: #{tpu_custom_call.1} parent=1 // pred_fallthru
      _
    %v21 = vld [vmem:[#allocation2] sm:$0xff]
    %v22 = vmul.f32 %v21, 100.0
    %v23 = vadd.f32 %v22, 8.0
    %v24 = vmul.f32 %v21, 0.0001
    %v26 = vrot.slane %v24, 7
    %v28 = vmul.f32 %v21, %v26
    %v29 = vadd.f32 %v28, 0.4
    %v31 = vrot.slane %v21, 3
    %v33 = vmul.f32 %v29, %v31
    %v34 = vrot.slane %v21, 4
    %v36 = vsub.f32 %v23, %v34
    %v38 = vrot.slane %v33, 3
    %v40 = vmul.f32 %v36, %v38
    %v41 = vrot.slane %v33, 2
    %v43 = vmul.f32 %v36, %v41
    %v45 = vrot.slane %v40, 6
    %v48 = vrot.slane %v43, 6
    %v51 = vrot.slane %v29, 7
    %v53 = vrot.slane %v29, 6
    %v55 = vrot.slane %v29, 5
    %v57 = vrot.slane %v29, 4
    %vm59 = vcmask 1041408
    %v60 = vsel %vm59, %v23, %v45
    %vm61 = vcmask 1042432
    %v62 = vsel %vm61, %v60, %v48
    %vm63 = vcmask 1043456
    %v64 = vsel %vm63, %v62, %v51
    %vm65 = vcmask 1044480
    %v66 = vsel %vm65, %v64, %v53
    %vm67 = vcmask 1045504
    %v68 = vsel %vm67, %v66, %v55
    %vm69 = vcmask 1046528
    %v70 = vsel %vm69, %v68, %v57
    %71 = vst [vmem:[#allocation5] sm:$0xff] %v70
    // Predicated region
    $region10: #{tpu_custom_call.1} parent=1 // pred_check
      _
    $region11: #{tpu_custom_call.1} parent=1 // pred_check_branch
      %73 = sbr.rel (0) target = $region13
    $region12: #{tpu_custom_call.1} parent=1 // pred_region
      %s75 = ssub.s32 128, 128
      %76 = vsyncadd [#allocation4], %s75
      %s78 = sshll.u32 [#allocation5], 4
      %s79 = int_to_ptr.vmem [resolvable:$true] %s78
      %81 = dma.vmem_to_hbm [thread:$0]  %s79, 128, %s1, [#allocation4]
    $region13: #{tpu_custom_call.1} parent=1 // pred_fallthru
      _
    // Predicated region
    $region14: #{tpu_custom_call.1} parent=1 // pred_check
      _
    $region15: #{tpu_custom_call.1} parent=1 // pred_check_branch
      %83 = sbr.rel (0) target = $region17
    $region16: #{tpu_custom_call.1} parent=1 // pred_region
      %84 = dma.done [#allocation4], 128
    $region17: #{tpu_custom_call.1} parent=1 // pred_fallthru
      _
    %85 = vsyncpa [#allocation3], 1
    %86 = vsyncpa [#allocation4], 1

</llo_original>
